<compile_context>
chip_gen: v7x
topology: tpu7x:2x2x1
jax: 0.10.0
libtpu: 0.0.40
codegen_flags: <defaults>
</compile_context>

<pallas_src>
import jax
import jax.numpy as jnp
from jax.experimental import pallas as pl
from jax.experimental.pallas import tpu as pltpu


def linear_kernel(bias_ref, xT_ref, w_ref, o_ref):
    # bias_ref: SMEM (1,)        -- scalar bias
    # xT_ref  : VMEM (K, tile_B) -- batch on lanes, K on sublanes
    # w_ref   : VMEM (K, 1)      -- weight column, broadcast along lanes
    # o_ref   : VMEM (1, tile_B) -- lane-dense output slab
    x = xT_ref[...]                            # (K, tB)
    w = w_ref[...]                             # (K, 1)
    prod = x * w                               # VPU elementwise, lane broadcast
    s = jnp.sum(prod, axis=0, keepdims=True)   # XLU sublane reduce -> (1, tB)
    o_ref[...] = (s + bias_ref[0]).astype(o_ref.dtype)


def _pick_batch_tile(B):
    """Largest lane-dense tile (multiple of 128) dividing B, else whole B.

    Capped at 4096 lanes: a (10, 4096) f32 input tile is ~160 KiB, so the
    double-buffered pipeline stays tiny in VMEM while per-step overhead
    (~0.35 us) is amortized over a large lane-dense slab.
    """
    if B % 128 == 0:
        for t in (4096, 2048, 1024, 512, 256, 128):
            if B % t == 0:
                return t
    return B  # whole-array block (valid: equals full array dim)


def linear_pallas(x, weight, bias):
    """x: (B, in_features), weight: (1, in_features), bias: (1,) -> (B, 1)."""
    B, K = x.shape
    N = weight.shape[0]
    assert N == 1, "Model spec is Linear(10 -> 1)"

    # Pure layout plumbing (no compute hoisted out of the kernel):
    xT = x.T                              # (K, B): batch on the lane axis
    w_col = weight.reshape(K, N)          # (K, 1): reshape, not transpose (N==1)
    b1 = bias.reshape(N)                  # (1,) scalar for SMEM

    tile_B = _pick_batch_tile(B)
    grid = (B // tile_B,)

    out = pl.pallas_call(
        linear_kernel,
        out_shape=jax.ShapeDtypeStruct((1, B), x.dtype),
        grid=grid,
        in_specs=[
            pl.BlockSpec(memory_space=pltpu.MemorySpace.SMEM),     # bias scalar
            pl.BlockSpec((K, tile_B), lambda i: (0, i)),           # xT tile
            pl.BlockSpec((K, N), lambda i: (0, 0)),                # weight (resident)
        ],
        out_specs=pl.BlockSpec((1, tile_B), lambda i: (0, i)),
        compiler_params=pltpu.CompilerParams(
            dimension_semantics=("parallel",),                     # shard batch axis
        ),
    )(b1, xT, w_col)

    return out.reshape(B, N)              # back to PyTorch's (B, 1) layout


if __name__ == "__main__":
    key = jax.random.PRNGKey(0)
    k_x, k_w, k_b = jax.random.split(key, 3)

    B, IN_FEATURES, OUT_FEATURES = 8, 10, 1

    # Deterministic parameter init mimicking torch.nn.Linear's default
    # uniform(-1/sqrt(in_features), 1/sqrt(in_features)).
    bound = 1.0 / jnp.sqrt(jnp.float32(IN_FEATURES))
    weight = jax.random.uniform(k_w, (OUT_FEATURES, IN_FEATURES),
                                jnp.float32, -bound, bound)
    bias = jax.random.uniform(k_b, (OUT_FEATURES,), jnp.float32, -bound, bound)

    x = jax.random.normal(k_x, (B, IN_FEATURES), jnp.float32)

    out = linear_pallas(x, weight, bias)
    out = jax.block_until_ready(out)

    # Reference check (plain JAX).
    ref = x @ weight.T + bias
    assert out.shape == (B, OUT_FEATURES)
    assert jnp.allclose(out, ref, atol=1e-5, rtol=1e-5)

    print("KERNEL_OK")
</pallas_src>

<mosaic_0001>
module attributes {stable_mosaic.version = 11 : i64} {
  func.func @linear_kernel(%arg0: i32, %arg1: memref<1xf32, #tpu.memory_space<smem>>, %arg2: memref<10x8xf32, #tpu.memory_space<vmem>>, %arg3: memref<10x1xf32, #tpu.memory_space<vmem>>, %arg4: memref<1x8xf32, #tpu.memory_space<vmem>>) attributes {dimension_semantics = [#tpu.dimension_semantics<parallel>], iteration_bounds = array<i64: 1>, scalar_prefetch = 0 : i64, scratch_operands = 0 : i64, tpu.core_type = #tpu.core_type<tc>, window_params = [{transform_indices = @transform_0, window_bounds = array<i64: 1>}, {transform_indices = @transform_1, window_bounds = array<i64: 10, 8>}, {pipeline_mode = #tpu.pipeline_mode<synchronous>, transform_indices = @transform_2, window_bounds = array<i64: 10, 1>}, {transform_indices = @transform_3, window_bounds = array<i64: 1, 8>}]} {
    %c0 = arith.constant 0 : index
    %c0_0 = arith.constant 0 : index
    %0 = vector.load %arg2[%c0, %c0_0] : memref<10x8xf32, #tpu.memory_space<vmem>>, vector<10x8xf32>
    %c0_1 = arith.constant 0 : index
    %c0_2 = arith.constant 0 : index
    %1 = vector.load %arg3[%c0_1, %c0_2] : memref<10x1xf32, #tpu.memory_space<vmem>>, vector<10x1xf32>
    %2 = vector.broadcast %1 : vector<10x1xf32> to vector<10x8xf32>
    %3 = arith.mulf %0, %2 : vector<10x8xf32>
    %cst = arith.constant dense<0.000000e+00> : vector<8xf32>
    %4 = vector.multi_reduction <add>, %3, %cst [0] : vector<10x8xf32> to vector<8xf32>
    %5 = vector.shape_cast %4 : vector<8xf32> to vector<1x8xf32>
    %c0_3 = arith.constant 0 : index
    %6 = memref.load %arg1[%c0_3] : memref<1xf32, #tpu.memory_space<smem>>
    %7 = vector.broadcast %6 : f32 to vector<1x8xf32>
    %8 = arith.addf %5, %7 : vector<1x8xf32>
    %c0_4 = arith.constant 0 : index
    %c0_5 = arith.constant 0 : index
    %9 = vector.load %arg4[%c0_4, %c0_5] : memref<1x8xf32, #tpu.memory_space<vmem>>, vector<1x8xf32>
    tpu.vector_store %arg4[%c0_4, %c0_5], %8 {strides = array<i32>} : memref<1x8xf32, #tpu.memory_space<vmem>>, vector<1x8xf32>,
    return
  }
  func.func @transform_0(%arg0: i32) -> i32 {
    %c0_i32 = arith.constant 0 : i32
    %c0_i32_0 = arith.constant 0 : i32
    return %c0_i32 : i32
  }
  func.func @transform_1(%arg0: i32) -> (i32, i32) {
    %c0_i32 = arith.constant 0 : i32
    %c0_i32_0 = arith.constant 0 : i32
    return %c0_i32, %arg0 : i32, i32
  }
  func.func @transform_2(%arg0: i32) -> (i32, i32) {
    %c0_i32 = arith.constant 0 : i32
    %c0_i32_0 = arith.constant 0 : i32
    %c0_i32_1 = arith.constant 0 : i32
    return %c0_i32, %c0_i32_0 : i32, i32
  }
  func.func @transform_3(%arg0: i32) -> (i32, i32) {
    %c0_i32 = arith.constant 0 : i32
    %c0_i32_0 = arith.constant 0 : i32
    return %c0_i32, %arg0 : i32, i32
  }
}

</mosaic_0001>

<llo_original>
// kernel: tpu_custom_call.1
$region0: #{tpu_custom_call.1}
  #allocation0 [shape = 'u32[]', space=smem, size = 0x4, offset = 0x4, fixed_abs, tag = 'smem constant byte address 0x4 - core index']
  #allocation1 [shape = 'u32[144,128]{1,0:T(1,128)}', space=vmem, size = 0x12000, scoped, tag = 'internal scratch']
  #allocation2 [shape = 'f32[1]{0:T(128)S(6)}', space=smem, size = 0x200, scoped, tag = 'scoped memory for tpu_custom_call.1']
  %s0 = inlined_call_operand.<no memory space> [shape: f32[1], index: 0, kind: input, shape index: {}]
  %s1 = inlined_call_operand.vmem [shape: f32[10,8], index: 1, kind: input, shape index: {}]
  %s2 = inlined_call_operand.vmem [shape: f32[10,1], index: 2, kind: input, shape index: {}]
  %s3 = inlined_call_operand.hbm [shape: f32[1,8], index: 3, kind: output, shape index: {}]
  %s4 = sld [smem:[#allocation0]]
  $region22: #{tpu_custom_call.1} parent=0
    _
  %s6 = ssub.s32 1, %s4
  %s7 = scalar_select 0, %s6, %s4
  %8 = sst [smem:[#allocation2]] %s0
  $region1: #{tpu_custom_call.1} parent=0
    #allocation3 [shape = 'u8[512]{0}', space=vmem, size = 0x400, scoped, tag = 'output window, operand 0, single buffered']
    #allocation4 [shape = 's32[1]{0}', space=sflag, size = 0x4, scoped, tag = 'scoped memory for tpu_custom_call.1']
    %9 = vsyncpa [#allocation4], 0
    // Predicated region
    $region2: #{tpu_custom_call.1} parent=1 // pred_check
      _
    $region3: #{tpu_custom_call.1} parent=1 // pred_check_branch
      %11 = sbr.rel (0) target = $region5
    $region4: #{tpu_custom_call.1} parent=1 // pred_region
      _
    $region5: #{tpu_custom_call.1} parent=1 // pred_fallthru
      _
    // Predicated region
    $region6: #{tpu_custom_call.1} parent=1 // pred_check
      _
    $region7: #{tpu_custom_call.1} parent=1 // pred_check_branch
      %13 = sbr.rel (0) target = $region9
    $region8: #{tpu_custom_call.1} parent=1 // pred_region
      _
    $region9: #{tpu_custom_call.1} parent=1 // pred_fallthru
      _
    // Predicated region
    $region10: #{tpu_custom_call.1} parent=1 // pred_check
      _
    $region11: #{tpu_custom_call.1} parent=1 // pred_check_branch
      %15 = sbr.rel (0) target = $region13
    $region12: #{tpu_custom_call.1} parent=1 // pred_region
      _
    $region13: #{tpu_custom_call.1} parent=1 // pred_fallthru
      _
    %v16 = vld [vmem:[%s1] sm:$0xff]
    %v17 = vld [vmem:[%s1 + $0x8] sm:$0x3]
    %v18 = vld [vmem:[%s2] sm:$0xff]
    %v19 = vld [vmem:[%s2 + $0x8] sm:$0x3]
    %21 = vset.pattern.permute.xlu0 0
    %22 = vperm.xlu0 %21, %v18
    %v23 = vpop.permute.xlu0 %22
    %26 = vset.pattern.permute.xlu0 0
    %27 = vperm.xlu0 %26, %v19
    %v28 = vpop.permute.xlu0 %27
    %v30 = vmul.f32 %v16, %v23
    %v31 = vmul.f32 %v17, %v28
    %vm32 = vcmask 64512
    %v33 = vsel %vm32, %v30, 0.0
    %vm34 = vcmask 58368
    %v35 = vsel %vm34, %v31, 0.0
    %v36 = vadd.f32 %v33, %v35
    %v37 = vrot.slane %v36, 4
    %v38 = vadd.f32 %v36, %v37
    %v39 = vrot.slane %v38, 2
    %v40 = vadd.f32 %v38, %v39
    %v41 = vrot.slane %v40, 1
    %v42 = vadd.f32 %v40, %v41
    %s43 = sld [smem:[#allocation2]]
    %v44 = vstv %s43
    %v45 = vadd.f32 %v42, %v44
    %vm46 = vcmask 57344
    %47 = vst.msk [vmem:[#allocation3] sm:$0x1] %vm46, %v45
    // Predicated region
    $region14: #{tpu_custom_call.1} parent=1 // pred_check
      _
    $region15: #{tpu_custom_call.1} parent=1 // pred_check_branch
      %49 = sbr.rel (0) target = $region17
    $region16: #{tpu_custom_call.1} parent=1 // pred_region
      %s51 = ssub.s32 16, 16
      %52 = vsyncadd [#allocation4], %s51
      %s54 = sshll.u32 [#allocation3], 4
      %s55 = int_to_ptr.vmem [resolvable:$true] %s54
      %57 = dma.vmem_to_hbm [thread:$0]  %s55, 16, %s3, [#allocation4]
    $region17: #{tpu_custom_call.1} parent=1 // pred_fallthru
      _
    // Predicated region
    $region18: #{tpu_custom_call.1} parent=1 // pred_check
      _
    $region19: #{tpu_custom_call.1} parent=1 // pred_check_branch
      %59 = sbr.rel (0) target = $region21
    $region20: #{tpu_custom_call.1} parent=1 // pred_region
      %60 = dma.done [#allocation4], 16
    $region21: #{tpu_custom_call.1} parent=1 // pred_fallthru
      _
    %61 = vsyncpa [#allocation4], 1

</llo_original>
